<compile_context>
chip_gen: v6e
topology: v6e:2x2x1
jax: 0.10.0
libtpu: 0.0.40
codegen_flags: <defaults>
</compile_context>

<pallas_src>
import jax
import jax.numpy as jnp
from jax.experimental import pallas as pl
from jax.experimental.pallas import tpu as pltpu


def _aconc_kernel(x_ref, params_ref, o_ref):
    # x_ref/o_ref: (Nb, Ct, Lt) tile; params_ref: (3, Ct, 1) f32 = [d, p2, nbd]
    x = x_ref[...].astype(jnp.float32)
    d = params_ref[0:1, :, :]      # p1 - p2
    p2 = params_ref[1:2, :, :]
    nbd = params_ref[2:3, :, :]    # -beta * (p1 - p2)

    dpx = d * x                    # == p1*x - p2*x
    p2x = p2 * x
    e = jnp.exp(nbd * x)           # == exp(-beta * dpx)   (EUP)
    sig = 1.0 / (1.0 + e)          # exact sigmoid(beta * dpx)
    o_ref[...] = (dpx * sig + p2x).astype(o_ref.dtype)


def _choose_tiles(N, C, L, itemsize, *, max_lt, max_ct, target_block_bytes):
    """Pick (Nb, Ct, Lt): lane-dense, sublane-aligned, ~target-sized blocks."""
    sub = {4: 8, 2: 16, 1: 32}.get(itemsize, 8)

    # Lane axis first (L is the contiguous axis in NCL -> long DMA bursts).
    Lt = L if L <= max_lt else max_lt               # max_lt is a multiple of 128

    # Sublane axis: full C when small, otherwise an aligned cap.
    if C <= max_ct:
        Ct = C
    else:
        Ct = (max_ct // sub) * sub

    # Fold batch into the block so each grid step still moves >= ~target bytes.
    block_bytes = Ct * Lt * itemsize
    Nb = int(min(N, max(1, target_block_bytes // block_bytes)))

    # v7x has 2 TensorCores: keep at least 2 grid steps when the data allows.
    if pl.cdiv(C, Ct) * pl.cdiv(L, Lt) * pl.cdiv(N, Nb) < 2 and N > 1:
        Nb = (N + 1) // 2
    return Nb, Ct, Lt


def aconc(x, p1, p2, beta, *, max_lt=4096, max_ct=256,
          target_block_bytes=4 << 20, min_lanes=128):
    """ACON-C forward.  x: (N, C, L); p1/p2/beta: (1, C, 1)."""
    N, C, L = x.shape
    assert p1.shape == (1, C, 1) and p2.shape == (1, C, 1) and beta.shape == (1, C, 1)

    # Fold the per-channel algebra once, in f32, on the tiny (1, C, 1) arrays.
    d = p1.astype(jnp.float32) - p2.astype(jnp.float32)          # p1 - p2
    p2f = p2.astype(jnp.float32)
    nbd = -(beta.astype(jnp.float32) * d)                        # -beta*(p1-p2)

    # Tiny-L shapes: Pallas stores would be heavily masked partial-lane stores,
    # and there is nothing for a kernel to win on a few KiB -> plain XLA.
    if L < min_lanes:
        x32 = x.astype(jnp.float32)
        dpx = d * x32
        out = dpx * jax.nn.sigmoid(-nbd * x32) + p2f * x32
        return out.astype(x.dtype)

    params = jnp.concatenate([d, p2f, nbd], axis=0)              # (3, C, 1) f32

    itemsize = jnp.dtype(x.dtype).itemsize
    Nb, Ct, Lt = _choose_tiles(N, C, L, itemsize, max_lt=max_lt, max_ct=max_ct,
                               target_block_bytes=target_block_bytes)
    grid = (pl.cdiv(N, Nb), pl.cdiv(C, Ct), pl.cdiv(L, Lt))

    x_spec = pl.BlockSpec((Nb, Ct, Lt), lambda n, c, l: (n, c, l))
    out_spec = pl.BlockSpec((Nb, Ct, Lt), lambda n, c, l: (n, c, l))
    # Params only change with the (slow) channel grid axis; the block index is
    # constant across the inner N/L steps so the tiny DMA is not re-issued.
    param_spec = pl.BlockSpec((3, Ct, 1), lambda n, c, l: (0, c, 0))

    # Explicit VMEM budget: double-buffered x+out tiles plus the (lane-padded)
    # params buffers, with headroom.  Kept <= 48 MiB so it fits v7x's 64 MiB
    # physical VMEM; v5e's default *scoped* limit is only 16 MiB so this must
    # be explicit once blocks are this large.
    io_bytes = 2 * 2 * Nb * Ct * Lt * itemsize
    params_bytes = 2 * 3 * (pl.cdiv(Ct, 8) * 8) * 128 * 4
    vmem_limit = int(min(max(2 * (io_bytes + params_bytes), 32 << 20), 48 << 20))

    return pl.pallas_call(
        _aconc_kernel,
        out_shape=jax.ShapeDtypeStruct((N, C, L), x.dtype),
        grid_spec=pltpu.PrefetchScalarGridSpec(
            num_scalar_prefetch=0,
            grid=grid,
            in_specs=[x_spec, param_spec],
            out_specs=out_spec,
        ),
        compiler_params=pltpu.CompilerParams(
            dimension_semantics=("parallel", "parallel", "parallel"),
            vmem_limit_bytes=vmem_limit,
        ),
    )(x, params)


if __name__ == "__main__":
    key = jax.random.PRNGKey(0)
    keys = jax.random.split(key, 8)

    def ref_fn(x, p1, p2, beta):
        x = x.astype(jnp.float32)
        p1 = p1.astype(jnp.float32)
        p2 = p2.astype(jnp.float32)
        beta = beta.astype(jnp.float32)
        dpx = p1 * x - p2 * x
        return dpx * jax.nn.sigmoid(beta * dpx) + p2 * x

    # 1) Small f32 case on the kernel path (lane-dense L); batch=2, channels=4.
    N, C, L = 2, 4, 256
    x = jax.random.normal(keys[0], (N, C, L), dtype=jnp.float32)
    p1 = jax.random.normal(keys[1], (1, C, 1), dtype=jnp.float32)
    p2 = jax.random.normal(keys[2], (1, C, 1), dtype=jnp.float32)
    beta = jnp.ones((1, C, 1), dtype=jnp.float32)
    out = jax.block_until_ready(aconc(x, p1, p2, beta))
    assert out.shape == (N, C, L)
    assert jnp.allclose(out, ref_fn(x, p1, p2, beta), atol=1e-5, rtol=1e-5)

    # 2) L-tiling + batch-folding path (L > 4096 -> two lane tiles, Nb = N).
    N2, C2, L2 = 3, 16, 4224
    x2 = jax.random.normal(keys[3], (N2, C2, L2), dtype=jnp.float32)
    p1b = jax.random.normal(keys[4], (1, C2, 1), dtype=jnp.float32)
    p2b = jax.random.normal(keys[5], (1, C2, 1), dtype=jnp.float32)
    betab = jnp.ones((1, C2, 1), dtype=jnp.float32)
    out2 = jax.block_until_ready(aconc(x2, p1b, p2b, betab))
    assert jnp.allclose(out2, ref_fn(x2, p1b, p2b, betab), atol=1e-5, rtol=1e-5)

    # 3) bf16 I/O path (f32 math inside the kernel, 16-row sublane alignment).
    N3, C3, L3 = 2, 32, 512
    x3 = jax.random.normal(keys[6], (N3, C3, L3), dtype=jnp.float32).astype(jnp.bfloat16)
    p1c = jax.random.normal(keys[7], (1, C3, 1), dtype=jnp.float32)
    p2c = jax.random.normal(keys[1], (1, C3, 1), dtype=jnp.float32)
    betac = jnp.ones((1, C3, 1), dtype=jnp.float32)
    out3 = jax.block_until_ready(aconc(x3, p1c, p2c, betac))
    assert out3.dtype == jnp.bfloat16
    assert jnp.allclose(out3.astype(jnp.float32), ref_fn(x3, p1c, p2c, betac),
                        atol=2e-2, rtol=2e-2)

    # 4) Tiny-L (L < 128) routes to the XLA fallback, same semantics.
    N4, C4, L4 = 2, 4, 16
    x4 = jax.random.normal(keys[2], (N4, C4, L4), dtype=jnp.float32)
    out4 = jax.block_until_ready(aconc(x4, p1, p2, beta))
    assert jnp.allclose(out4, ref_fn(x4, p1, p2, beta), atol=1e-5, rtol=1e-5)

    print("KERNEL_OK")
</pallas_src>

<mosaic_0001>
module attributes {stable_mosaic.version = 11 : i64} {
  func.func @_aconc_kernel(%arg0: i32, %arg1: i32, %arg2: i32, %arg3: memref<1x4x256xf32, #tpu.memory_space<vmem>>, %arg4: memref<3x4x1xf32, #tpu.memory_space<vmem>>, %arg5: memref<1x4x256xf32, #tpu.memory_space<vmem>>) attributes {dimension_semantics = [#tpu.dimension_semantics<parallel>, #tpu.dimension_semantics<parallel>, #tpu.dimension_semantics<parallel>], iteration_bounds = array<i64: 2, 1, 1>, scalar_prefetch = 0 : i64, scratch_operands = 0 : i64, tpu.core_type = #tpu.core_type<tc>, window_params = [{transform_indices = @transform_0, window_bounds = array<i64: 1, 4, 256>}, {transform_indices = @transform_1, window_bounds = array<i64: 3, 4, 1>}, {transform_indices = @transform_2, window_bounds = array<i64: 1, 4, 256>}]} {
    %c0 = arith.constant 0 : index
    %c0_0 = arith.constant 0 : index
    %c0_1 = arith.constant 0 : index
    %0 = vector.load %arg3[%c0, %c0_0, %c0_1] : memref<1x4x256xf32, #tpu.memory_space<vmem>>, vector<1x4x256xf32>
    %c0_2 = arith.constant 0 : index
    %c0_3 = arith.constant 0 : index
    %c0_4 = arith.constant 0 : index
    %1 = vector.load %arg4[%c0_2, %c0_3, %c0_4] : memref<3x4x1xf32, #tpu.memory_space<vmem>>, vector<1x4x1xf32>
    %c1 = arith.constant 1 : index
    %c0_5 = arith.constant 0 : index
    %c0_6 = arith.constant 0 : index
    %2 = vector.load %arg4[%c1, %c0_5, %c0_6] : memref<3x4x1xf32, #tpu.memory_space<vmem>>, vector<1x4x1xf32>
    %c2 = arith.constant 2 : index
    %c0_7 = arith.constant 0 : index
    %c0_8 = arith.constant 0 : index
    %3 = vector.load %arg4[%c2, %c0_7, %c0_8] : memref<3x4x1xf32, #tpu.memory_space<vmem>>, vector<1x4x1xf32>
    %4 = vector.broadcast %1 : vector<1x4x1xf32> to vector<1x4x256xf32>
    %5 = arith.mulf %4, %0 : vector<1x4x256xf32>
    %6 = vector.broadcast %2 : vector<1x4x1xf32> to vector<1x4x256xf32>
    %7 = arith.mulf %6, %0 : vector<1x4x256xf32>
    %8 = vector.broadcast %3 : vector<1x4x1xf32> to vector<1x4x256xf32>
    %9 = arith.mulf %8, %0 : vector<1x4x256xf32>
    %10 = math.exp %9 : vector<1x4x256xf32>
    %cst = arith.constant 1.000000e+00 : f32
    %11 = vector.broadcast %cst : f32 to vector<1x4x256xf32>
    %12 = arith.addf %11, %10 : vector<1x4x256xf32>
    %cst_9 = arith.constant 1.000000e+00 : f32
    %13 = vector.broadcast %cst_9 : f32 to vector<1x4x256xf32>
    %14 = arith.divf %13, %12 : vector<1x4x256xf32>
    %15 = arith.mulf %5, %14 : vector<1x4x256xf32>
    %16 = arith.addf %15, %7 : vector<1x4x256xf32>
    %c0_10 = arith.constant 0 : index
    %c0_11 = arith.constant 0 : index
    %c0_12 = arith.constant 0 : index
    %17 = vector.load %arg5[%c0_10, %c0_11, %c0_12] : memref<1x4x256xf32, #tpu.memory_space<vmem>>, vector<1x4x256xf32>
    tpu.vector_store %arg5[%c0_10, %c0_11, %c0_12], %16 {strides = array<i32>} : memref<1x4x256xf32, #tpu.memory_space<vmem>>, vector<1x4x256xf32>,
    return
  }
  func.func @transform_0(%arg0: i32, %arg1: i32, %arg2: i32) -> (i32, i32, i32) {
    %c0_i32 = arith.constant 0 : i32
    return %arg0, %arg1, %arg2 : i32, i32, i32
  }
  func.func @transform_1(%arg0: i32, %arg1: i32, %arg2: i32) -> (i32, i32, i32) {
    %c0_i32 = arith.constant 0 : i32
    %c0_i32_0 = arith.constant 0 : i32
    %c0_i32_1 = arith.constant 0 : i32
    return %c0_i32, %arg1, %c0_i32_0 : i32, i32, i32
  }
  func.func @transform_2(%arg0: i32, %arg1: i32, %arg2: i32) -> (i32, i32, i32) {
    %c0_i32 = arith.constant 0 : i32
    return %arg0, %arg1, %arg2 : i32, i32, i32
  }
}

</mosaic_0001>

<llo_original>
// kernel: tpu_custom_call.1
$region0: #{tpu_custom_call.1}
  #allocation0 [shape = 'u32[]', space=smem, size = 0x4, offset = 0x4, fixed_abs, tag = 'smem constant byte address 0x4 - core index']
  #allocation1 [shape = 'u32[144,128]{1,0:T(1,128)}', space=vmem, size = 0x12000, scoped, tag = 'internal scratch']
  %s0 = inlined_call_operand.hbm [shape: f32[2,4,256], index: 0, kind: input, shape index: {}]
  %s1 = inlined_call_operand.vmem [shape: f32[3,4,1], index: 1, kind: input, shape index: {}]
  %s2 = inlined_call_operand.hbm [shape: f32[2,4,256], index: 2, kind: output, shape index: {}]
  %s3 = sld [smem:[#allocation0]]
  $region45: #{tpu_custom_call.1} parent=0
    _
  %s5 = ssub.s32 1, %s3
  %s6 = scalar_select 0, %s5, %s3
  $region1: #{tpu_custom_call.1} parent=0
    #allocation2 [shape = 'u8[8192]{0}', space=vmem, size = 0x2000, scoped, tag = 'input window, operand 0']
    #allocation3 [shape = 's32[2]{0}', space=sflag, size = 0x8, scoped, tag = 'scoped memory for tpu_custom_call.1']
    #allocation4 [shape = 's32[2]{0}', space=sflag, size = 0x8, scoped, tag = 'scoped memory for tpu_custom_call.1']
    #allocation5 [shape = 'u8[8192]{0}', space=vmem, size = 0x2000, scoped, tag = 'output window, operand 0']
    %7 = vsyncpa [#allocation3], 0
    %s8 = scalar_lea.sflag [#allocation3], 1
    %9 = vsyncpa %s8, 0
    %10 = vsyncpa [#allocation4], 0
    %s11 = scalar_lea.sflag [#allocation4], 1
    %12 = vsyncpa %s11, 0
    loop: start=0, step=1, limit=4
    $region2: #{tpu_custom_call.1} parent=1 // loop_pre_header
      _
    $region3: #{tpu_custom_call.1} parent=1 // loop_header
      %s14 = sphi 0, %s18
      %p15 = scmp.ge.s32.totalorder %s14, 4
      %s21 = sphi 0, %s40
      %s22 = sphi 0, %s36
      %s23 = sphi 0, %s32
      %s24 = sphi 0, %s21
      %s25 = sphi 0, %s22
      %s26 = sphi 0, %s23
      %s27 = sphi 0, %s24
      %s28 = sphi 0, %s25
      %s29 = sphi 0, %s26
      %s47 = sphi 0, %s49
      %s50 = sphi 0, %s47
      %s51 = sphi 0, %s50
      %s67 = sphi 0, %s51
      %s73 = sphi 0, %s75
      %s76 = sphi 0, %s73
      %s77 = sphi 0, %s76
      %s93 = sphi 0, %s77
      %s103 = sphi 0, %s105
      %s106 = sphi 0, %s103
      %s107 = sphi 0, %s106
      %s123 = sphi 0, %s107
    $region4: #{tpu_custom_call.1} parent=1 // loop_header_branch
      %17 = sbr.rel (%p15) target = $region8
    $region5: #{tpu_custom_call.1} parent=1 // loop_body
      %s19 = ssub.s32 %s14, 1
      %s20 = ssub.s32 %s14, 2
      %s30 = sadd.s32 1, %s23
      %p31 = scmp.ge.s32.totalorder %s30, 1
      %s32 = scalar_select %p31, 0, %s30
      %s33 = sadd.s32 1, %s22
      %s34 = scalar_select %p31, %s33, %s22
      %p35 = scmp.ge.s32.totalorder %s34, 1
      %s36 = scalar_select %p35, 0, %s34
      %s37 = sadd.s32 1, %s21
      %s38 = scalar_select %p35, %s37, %s21
      %p39 = scmp.ge.s32.totalorder %s38, 2
      %s40 = scalar_select %p39, 0, %s38
      %s41 = ssub.s32 %s21, %s40
      %s42 = ssub.s32 %s22, %s36
      %s43 = sor.u32 %s41, %s42
      %s44 = ssub.s32 %s23, %s32
      %s45 = sor.u32 %s43, %s44
      %p46 = scmp.eq.s32.totalorder %s45, 0
      %s48 = sadd.s32 %s47, 1
      %s49 = scalar_select %p46, %s47, %s48
      %p52 = pneg %p46
      %p53 = scmp.eq.s32.totalorder %s14, 1
      %p54 = por %p52, %p53
      %p55 = scmp.ne.s32.totalorder %s47, %s50
      %p56 = scmp.eq.s32.totalorder %s14, 0
      %p57 = por %p55, %p56
      %p58 = scmp.ne.s32.totalorder %s47, %s50
      %p59 = scmp.eq.s32.totalorder %s19, 1
      %p60 = por %p58, %p59
      %p61 = scmp.ne.s32.totalorder %s50, %s51
      %p62 = scmp.eq.s32.totalorder %s19, 0
      %p63 = por %p61, %p62
      %p64 = scmp.ne.s32.totalorder %s50, %s51
      %p65 = scmp.eq.s32.totalorder %s20, 1
      %p66 = por %p64, %p65
      %p68 = scmp.ne.s32.totalorder %s51, %s67
      %p69 = scmp.eq.s32.totalorder %s20, 0
      %p70 = por %p68, %p69
      %s71 = ssub.s32 %s22, %s36
      %p72 = scmp.eq.s32.totalorder %s71, 0
      %s74 = sadd.s32 %s73, 1
      %s75 = scalar_select %p72, %s73, %s74
      %p78 = pneg %p72
      %p79 = scmp.eq.s32.totalorder %s14, 1
      %p80 = por %p78, %p79
      %p81 = scmp.ne.s32.totalorder %s73, %s76
      %p82 = scmp.eq.s32.totalorder %s14, 0
      %p83 = por %p81, %p82
      %p84 = scmp.ne.s32.totalorder %s73, %s76
      %p85 = scmp.eq.s32.totalorder %s19, 1
      %p86 = por %p84, %p85
      %p87 = scmp.ne.s32.totalorder %s76, %s77
      %p88 = scmp.eq.s32.totalorder %s19, 0
      %p89 = por %p87, %p88
      %p90 = scmp.ne.s32.totalorder %s76, %s77
      %p91 = scmp.eq.s32.totalorder %s20, 1
      %p92 = por %p90, %p91
      %p94 = scmp.ne.s32.totalorder %s77, %s93
      %p95 = scmp.eq.s32.totalorder %s20, 0
      %p96 = por %p94, %p95
      %s97 = ssub.s32 %s21, %s40
      %s98 = ssub.s32 %s22, %s36
      %s99 = sor.u32 %s97, %s98
      %s100 = ssub.s32 %s23, %s32
      %s101 = sor.u32 %s99, %s100
      %p102 = scmp.eq.s32.totalorder %s101, 0
      %s104 = sadd.s32 %s103, 1
      %s105 = scalar_select %p102, %s103, %s104
      %p108 = pneg %p102
      %p109 = scmp.eq.s32.totalorder %s14, 1
      %p110 = por %p108, %p109
      %p111 = scmp.ne.s32.totalorder %s103, %s106
      %p112 = scmp.eq.s32.totalorder %s14, 0
      %p113 = por %p111, %p112
      %p114 = scmp.ne.s32.totalorder %s103, %s106
      %p115 = scmp.eq.s32.totalorder %s19, 1
      %p116 = por %p114, %p115
      %p117 = scmp.ne.s32.totalorder %s106, %s107
      %p118 = scmp.eq.s32.totalorder %s19, 0
      %p119 = por %p117, %p118
      %p120 = scmp.ne.s32.totalorder %s106, %s107
      %p121 = scmp.eq.s32.totalorder %s20, 1
      %p122 = por %p120, %p121
      %p124 = scmp.ne.s32.totalorder %s107, %s123
      %p125 = scmp.eq.s32.totalorder %s20, 0
      %p126 = por %p124, %p125
      %p127 = scmp.le.s32.totalorder 1, %s14
      %p128 = scmp.lt.s32.totalorder %s14, 3
      %p129 = pnand %p127, %p128
      %p130 = pneg %p129
      // Predicated region
      $region9: #{tpu_custom_call.1} parent=5 // pred_check
        _
      $region10: #{tpu_custom_call.1} parent=5 // pred_check_branch
        %132 = sbr.rel (%p129) target = $region12
      $region11: #{tpu_custom_call.1} parent=5 // pred_region
        %s133 = ssub.s32 %s14, 1
        // Predicated region
        $region13: #{tpu_custom_call.1} parent=11 // pred_check
          %p134 = pneg %p89
        $region14: #{tpu_custom_call.1} parent=11 // pred_check_branch
          %136 = sbr.rel (%p134) target = $region16
        $region15: #{tpu_custom_call.1} parent=11 // pred_region
          %p137 = scmp.lt.s32.totalorder %s25, 0
          %s138 = scalar_select %p137, %s25, 0
          %s139 = smul.addr %s138, 4
          %s140 = scalar_lea.vmem %s1, %s139
        $region16: #{tpu_custom_call.1} parent=11 // pred_fallthru
          _
      $region12: #{tpu_custom_call.1} parent=5 // pred_fallthru
        _
      %p141 = scmp.lt.s32.totalorder %s14, 2
      // Predicated region
      $region17: #{tpu_custom_call.1} parent=5 // pred_check
        %p142 = pneg %p141
      $region18: #{tpu_custom_call.1} parent=5 // pred_check_branch
        %144 = sbr.rel (%p142) target = $region20
      $region19: #{tpu_custom_call.1} parent=5 // pred_region
        // Predicated region
        $region21: #{tpu_custom_call.1} parent=19 // pred_check
          %p145 = pneg %p57
        $region22: #{tpu_custom_call.1} parent=19 // pred_check_branch
          %147 = sbr.rel (%p145) target = $region24
        $region23: #{tpu_custom_call.1} parent=19 // pred_region
          %s148 = sand.u32 %s47, 1
          %s149 = scalar_lea.sflag [#allocation3], %s148
          %s150 = sand.u32 %s47, 1
          %s151 = smul.addr %s150, 8
          %s152 = scalar_lea.vmem [#allocation2], %s151
          %s153 = smul.u32 2, %s23
          %s155 = ssub.s32 128, 128
          %156 = vsyncadd %s149, %s155
          %s157 = smul.addr %s22, 2
          %s158 = sadd.s32 %s153, %s157
          %s159 = smul.addr %s21, 2
          %s160 = sadd.s32 %s158, %s159
          %s161 = smul.addr %s160, 64
          %s162 = scalar_lea.hbm %s0, %s161
          %s164 = sshll.u32 %s152, 4
          %s165 = int_to_ptr.vmem [resolvable:$true] %s164
          %167 = dma.hbm_to_vmem [thread:$0]  %s162, 128, %s165, %s149
        $region24: #{tpu_custom_call.1} parent=19 // pred_fallthru
          _
      $region20: #{tpu_custom_call.1} parent=5 // pred_fallthru
        _
      %p168 = scmp.le.s32.totalorder 1, %s14
      %p169 = scmp.lt.s32.totalorder %s14, 3
      %p170 = pnand %p168, %p169
      %p171 = pneg %p170
      // Predicated region
      $region25: #{tpu_custom_call.1} parent=5 // pred_check
        _
      $region26: #{tpu_custom_call.1} parent=5 // pred_check_branch
        %173 = sbr.rel (%p170) target = $region28
      $region27: #{tpu_custom_call.1} parent=5 // pred_region
        %s174 = ssub.s32 %s14, 1
        %s175 = sand.u32 %s50, 1
        %s176 = scalar_lea.sflag [#allocation3], %s175
        %s177 = sand.u32 %s50, 1
        %s178 = smul.addr %s177, 8
        %s179 = scalar_lea.vmem [#allocation2], %s178
        // Predicated region
        $region29: #{tpu_custom_call.1} parent=27 // pred_check
          %p180 = pneg %p63
        $region30: #{tpu_custom_call.1} parent=27 // pred_check_branch
          %182 = sbr.rel (%p180) target = $region32
        $region31: #{tpu_custom_call.1} parent=27 // pred_region
          %183 = dma.done %s176, 128
        $region32: #{tpu_custom_call.1} parent=27 // pred_fallthru
          _
        %s184 = sand.u32 %s50, 1
        %s185 = scalar_lea.sflag [#allocation3], %s184
        %s186 = sand.u32 %s50, 1
        %s187 = smul.addr %s186, 8
        %s188 = scalar_lea.vmem [#allocation2], %s187
        %p189 = pneg %p63
        %p190 = pneg %p60
        %p191 = scmp.lt.s32.totalorder %s25, 0
        %s192 = scalar_select %p191, %s25, 0
        %s193 = smul.addr %s192, 4
        %s194 = scalar_lea.vmem %s1, %s193
        %p195 = pneg %p89
        %p196 = pneg %p86
        %p197 = pneg %p119
        %p198 = pneg %p116
        %s199 = sand.u32 %s106, 1
        %s200 = scalar_lea.sflag [#allocation4], %s199
        %s201 = sand.u32 %s106, 1
        %s202 = smul.addr %s201, 8
        %s203 = scalar_lea.vmem [#allocation5], %s202
        %s204 = smul.u32 2, %s26
        %p205 = scmp.lt.s32.totalorder %s25, 0
        %s206 = scalar_select %p205, %s25, 0
        %s207 = smul.addr %s206, 4
        %s208 = scalar_lea.vmem %s1, %s207
        %s209 = smul.u32 2, %s26
        %v210 = vld [vmem:[%s179] sm:$0xff]
        %v211 = vld [vmem:[%s208] sm:$0xf]
        %s212 = scalar_lea.vmem %s208, 4
        %v213 = vld [vmem:[%s212] sm:$0xf]
        %s214 = scalar_lea.vmem %s208, 8
        %v215 = vld [vmem:[%s214] sm:$0xf]
        %217 = vset.pattern.permute.xlu0 0
        %218 = vperm.xlu0 %217, %v211
        %v219 = vpop.permute.xlu0 %218
        %v222 = vcombine.high %v210, %v210
        %v224 = vmul.f32 %v219, %v210
        %v225 = vmul.f32 %v219, %v222
        %227 = vset.pattern.permute.xlu0 0
        %228 = vperm.xlu0 %227, %v213
        %v229 = vpop.permute.xlu0 %228
        %v231 = vmul.f32 %v229, %v210
        %v232 = vmul.f32 %v229, %v222
        %234 = vset.pattern.permute.xlu0 0
        %235 = vperm.xlu0 %234, %v215
        %v236 = vpop.permute.xlu0 %235
        %v238 = vmul.f32 %v236, %v210
        %v239 = vmul.f32 %v236, %v222
        %v240 = vmul.f32 %v238, 1.442695
        %v241 = vpow.pop %v240
        %v242 = vmul.f32 %v239, 1.442695
        %v243 = vpow.pop %v242
        %v244 = vadd.f32 %v241, 1.0
        %v245 = vadd.f32 %v243, 1.0
        %v246 = vrcp.pop %v244
        %v247 = vmul.f32 1.0, %v246
        %v248 = vrcp.pop %v245
        %v249 = vmul.f32 1.0, %v248
        %v250 = vmul.f32 %v224, %v247
        %v251 = vmul.f32 %v225, %v249
        %v252 = vadd.f32 %v250, %v231
        %v253 = vadd.f32 %v251, %v232
        %v256 = vcombine.low %v252, %v253
        %258 = vst [vmem:[%s203] sm:$0xff] %v256
        %s259 = sand.u32 %s106, 1
        %s260 = scalar_lea.sflag [#allocation4], %s259
        %s261 = sand.u32 %s106, 1
        %s262 = smul.addr %s261, 8
        %s263 = scalar_lea.vmem [#allocation5], %s262
        // Predicated region
        $region33: #{tpu_custom_call.1} parent=27 // pred_check
          %p264 = pneg %p116
        $region34: #{tpu_custom_call.1} parent=27 // pred_check_branch
          %266 = sbr.rel (%p264) target = $region36
        $region35: #{tpu_custom_call.1} parent=27 // pred_region
          %s267 = smul.u32 2, %s26
          %s269 = ssub.s32 128, 128
          %270 = vsyncadd %s260, %s269
          %s271 = smul.addr %s25, 2
          %s272 = sadd.s32 %s267, %s271
          %s273 = smul.addr %s24, 2
          %s274 = sadd.s32 %s272, %s273
          %s275 = smul.addr %s274, 64
          %s276 = scalar_lea.hbm %s2, %s275
          %s278 = sshll.u32 %s263, 4
          %s279 = int_to_ptr.vmem [resolvable:$true] %s278
          %281 = dma.vmem_to_hbm [thread:$0]  %s279, 128, %s276, %s260
        $region36: #{tpu_custom_call.1} parent=27 // pred_fallthru
          _
      $region28: #{tpu_custom_call.1} parent=5 // pred_fallthru
        _
      %p282 = scmp.le.s32.totalorder 2, %s14
      // Predicated region
      $region37: #{tpu_custom_call.1} parent=5 // pred_check
        %p283 = pneg %p282
      $region38: #{tpu_custom_call.1} parent=5 // pred_check_branch
        %285 = sbr.rel (%p283) target = $region40
      $region39: #{tpu_custom_call.1} parent=5 // pred_region
        %s286 = ssub.s32 %s14, 2
        // Predicated region
        $region41: #{tpu_custom_call.1} parent=39 // pred_check
          %p287 = pneg %p122
        $region42: #{tpu_custom_call.1} parent=39 // pred_check_branch
          %289 = sbr.rel (%p287) target = $region44
        $region43: #{tpu_custom_call.1} parent=39 // pred_region
          %s290 = sand.u32 %s107, 1
          %s291 = scalar_lea.sflag [#allocation4], %s290
          %s292 = sand.u32 %s107, 1
          %s293 = smul.addr %s292, 8
          %s294 = scalar_lea.vmem [#allocation5], %s293
          %295 = dma.done %s291, 128
        $region44: #{tpu_custom_call.1} parent=39 // pred_fallthru
          _
      $region40: #{tpu_custom_call.1} parent=5 // pred_fallthru
        _
    $region6: #{tpu_custom_call.1} parent=1 // loop_footer
      %s18 = sadd.s32 1, %s14
    $region7: #{tpu_custom_call.1} parent=1 // loop_footer_branch
      %13 = sbr.rel target = $region3
    $region8: #{tpu_custom_call.1} parent=1 // loop_exit
      _
    %296 = vsyncpa [#allocation3], 1
    %s297 = scalar_lea.sflag [#allocation3], 1
    %298 = vsyncpa %s297, 1
    %299 = vsyncpa [#allocation4], 1
    %s300 = scalar_lea.sflag [#allocation4], 1
    %301 = vsyncpa %s300, 1

</llo_original>
